<compile_context>
chip_gen: v5e
topology: v5e:2x2
jax: 0.10.0
libtpu: 0.0.40
codegen_flags: <defaults>
</compile_context>

<pallas_src>
import jax
import jax.numpy as jnp
from jax.experimental import pallas as pl
from jax.experimental.pallas import tpu as pltpu

NCORES = 2                              # megacore split of the block range
TARGET_BLOCK_BYTES = 4 * 1024 * 1024    # per-input block (f32 budget)
CHUNK_ELEMS = 8 * 128 * 16              # inner accumulation chunk (~64 KiB f32)


def _round_up(x: int, m: int) -> int:
    return -(-x // m) * m


def _make_mse_kernel(*, width, tile_rows, chunk_rows, n_chunks, n_blocks,
                     tiles_per_core, rows_valid, has_tail, unroll):
    groups = chunk_rows // 8

    def block_sum(a_ref, b_ref, tail_base):
        def step(c, acc):
            r0 = pl.multiple_of(c * chunk_rows, 8)
            a = a_ref[pl.ds(r0, chunk_rows), :].astype(jnp.float32)
            b = b_ref[pl.ds(r0, chunk_rows), :].astype(jnp.float32)
            d = a - b
            if tail_base is not None:
                # Zero rows past the real data (the partial tail block's
                # buffer holds garbage beyond `rows_valid`) BEFORE squaring.
                row_ids = tail_base + r0 + jax.lax.broadcasted_iota(
                    jnp.int32, (chunk_rows, 1), 0)
                d = jnp.where(row_ids < rows_valid, d, 0.0)
            sq = d * d
            # Sum over sublane groups only: pure VALU vreg adds into the
            # (8, width) accumulator; no per-step cross-lane reduce.
            return acc + jnp.sum(sq.reshape(groups, 8, width), axis=0)

        return jax.lax.fori_loop(0, n_chunks, step,
                                 jnp.zeros((8, width), jnp.float32),
                                 unroll=unroll)

    def kernel(a_ref, b_ref, o_ref):
        i = pl.program_id(1)  # reduction step within this core's block range

        @pl.when(i == 0)
        def _init():
            o_ref[...] = jnp.zeros_like(o_ref)

        t = pl.program_id(0) * tiles_per_core + i  # global block index

        if has_tail:
            is_tail = t == (n_blocks - 1)

            @pl.when(jnp.logical_not(is_tail))
            def _full():
                o_ref[...] += block_sum(a_ref, b_ref, None)

            @pl.when(is_tail)
            def _tail():
                o_ref[...] += block_sum(a_ref, b_ref, t * tile_rows)
        else:
            o_ref[...] += block_sum(a_ref, b_ref, None)

    return kernel


def joint_mse_loss(y_hat: jax.Array, y: jax.Array) -> jax.Array:
    """MSE(y_hat, y) with reduction='mean', matching torch.nn.MSELoss."""
    assert y_hat.shape == y.shape, "shapes must match"
    n = y_hat.size
    assert n > 0

    # Flatten ONLY the leading dims; keep the original trailing dim so no
    # lane-relayout copy is needed (the last block dim equals the full array
    # dim, which BlockSpec allows regardless of 128-divisibility).
    if y_hat.ndim < 2:
        a2 = y_hat.reshape(1, n)
        b2 = y.reshape(1, n)
    else:
        w = y_hat.shape[-1]
        a2 = y_hat.reshape(-1, w)
        b2 = y.reshape(-1, w)

    rows0, width = a2.shape

    # Pad the row count to a multiple of 8 (sublane granularity).  Padded rows
    # are identical zeros in both operands -> contribute exactly 0 to the sum;
    # the divisor stays the ORIGINAL element count.
    rows = max(8, _round_up(rows0, 8))
    if rows != rows0:
        a2 = jnp.pad(a2, ((0, rows - rows0), (0, 0)))
        b2 = jnp.pad(b2, ((0, rows - rows0), (0, 0)))

    # ---- tiling -----------------------------------------------------------
    # Inner accumulation chunk (bounds vreg live ranges).
    chunk_rows = min(rows, max(8, (CHUNK_ELEMS // width) // 8 * 8))
    # Outer block (per-grid-step DMA tile), sized ~TARGET_BLOCK_BYTES.
    target_elems = TARGET_BLOCK_BYTES // 4
    n_chunks = max(1, min(target_elems // (chunk_rows * width),
                          rows // chunk_rows))
    tile_rows = chunk_rows * n_chunks               # always a multiple of 8
    n_blocks = pl.cdiv(rows, tile_rows)
    has_tail = (n_blocks * tile_rows) != rows

    # Megacore split only when blocks divide evenly: no clamped/padded grid
    # steps that would refetch a block and throw it away.
    ncores = NCORES if (n_blocks >= NCORES and n_blocks % NCORES == 0) else 1
    tiles_per_core = n_blocks // ncores

    unroll = max(1, min(n_chunks, 8))

    kernel = _make_mse_kernel(
        width=width, tile_rows=tile_rows, chunk_rows=chunk_rows,
        n_chunks=n_chunks, n_blocks=n_blocks, tiles_per_core=tiles_per_core,
        rows_valid=rows, has_tail=has_tail, unroll=unroll)

    itemsize = max(jnp.dtype(a2.dtype).itemsize, 4)
    block_bytes = tile_rows * width * itemsize
    # 2 inputs x 2 buffers + slack; explicit bump needed for v5e's 16 MiB
    # scoped default, capped safely below v7x's 64 MiB physical VMEM.
    vmem_limit = int(min(48 * 1024 * 1024,
                         max(32 * 1024 * 1024,
                             4 * block_bytes + 4 * 1024 * 1024)))

    def in_map(p, i):
        return (p * tiles_per_core + i, 0)

    partials = pl.pallas_call(
        kernel,
        out_shape=jax.ShapeDtypeStruct((ncores * 8, width), jnp.float32),
        grid_spec=pltpu.PrefetchScalarGridSpec(
            num_scalar_prefetch=0,
            grid=(ncores, tiles_per_core),
            in_specs=[
                pl.BlockSpec((tile_rows, width), in_map),
                pl.BlockSpec((tile_rows, width), in_map),
            ],
            out_specs=pl.BlockSpec((8, width), lambda p, i: (p, 0)),
        ),
        compiler_params=pltpu.CompilerParams(
            dimension_semantics=("parallel", "arbitrary"),
            vmem_limit_bytes=vmem_limit,
        ),
    )(a2, b2)

    # Tiny one-time cross-lane reduce + divide in the wrapper epilogue.
    return (jnp.sum(partials) / jnp.float32(n)).astype(jnp.float32)


def _check(shape, key, rtol):
    k1, k2 = jax.random.split(key)
    y_hat = jax.random.normal(k1, shape, dtype=jnp.float32)
    y = jax.random.normal(k2, shape, dtype=jnp.float32)
    loss = joint_mse_loss(y_hat, y)
    jax.block_until_ready(loss)
    ref = jnp.mean((y_hat - y) ** 2)
    assert bool(jnp.allclose(loss, ref, rtol=rtol, atol=1e-6)), (shape, loss, ref)


if __name__ == "__main__":
    key = jax.random.PRNGKey(0)
    k0, k1, k2, k3 = jax.random.split(key, 4)

    # Primary shape from the module spec: (batch, 2, H, W) region/affinity maps.
    _check((2, 2, 16, 16), k0, 1e-5)
    # Ragged row count and non-128 width (exercises row padding + narrow lanes).
    _check((1, 2, 7, 9), k1, 1e-5)
    # Multi-block grid with partial tail block + megacore split, width % 128 != 0.
    _check((2, 2, 128, 96), k2, 1e-5)
    # Lane-multiple width path.
    _check((2, 2, 64, 256), k3, 1e-5)

    print("KERNEL_OK")
</pallas_src>

<mosaic_0001>
module attributes {stable_mosaic.version = 11 : i64} {
  func.func @kernel(%arg0: i32, %arg1: i32, %arg2: memref<64x16xf32, #tpu.memory_space<vmem>>, %arg3: memref<64x16xf32, #tpu.memory_space<vmem>>, %arg4: memref<8x16xf32, #tpu.memory_space<vmem>>) attributes {dimension_semantics = [#tpu.dimension_semantics<parallel>, #tpu.dimension_semantics<arbitrary>], iteration_bounds = array<i64: 1, 1>, scalar_prefetch = 0 : i64, scratch_operands = 0 : i64, tpu.core_type = #tpu.core_type<tc>, window_params = [{transform_indices = @transform_0, window_bounds = array<i64: 64, 16>}, {transform_indices = @transform_1, window_bounds = array<i64: 64, 16>}, {transform_indices = @transform_2, window_bounds = array<i64: 8, 16>}]} {
    %c0_i32 = arith.constant 0 : i32
    %0 = arith.cmpi eq, %arg1, %c0_i32 : i32
    %1 = arith.extui %0 : i1 to i32
    %c0_i32_0 = arith.constant 0 : i32
    %2 = arith.cmpi ne, %1, %c0_i32_0 : i32
    scf.if %2 {
      %cst_8 = arith.constant 0.000000e+00 : f32
      %18 = vector.broadcast %cst_8 : f32 to vector<8x16xf32>
      %c0_9 = arith.constant 0 : index
      %c0_10 = arith.constant 0 : index
      %19 = vector.load %arg4[%c0_9, %c0_10] : memref<8x16xf32, #tpu.memory_space<vmem>>, vector<8x16xf32>
      tpu.vector_store %arg4[%c0_9, %c0_10], %18 {strides = array<i32>} : memref<8x16xf32, #tpu.memory_space<vmem>>, vector<8x16xf32>,
    } else {
    }
    %c0 = arith.constant 0 : index
    %c0_1 = arith.constant 0 : index
    %3 = vector.load %arg4[%c0, %c0_1] : memref<8x16xf32, #tpu.memory_space<vmem>>, vector<8x16xf32>
    %cst = arith.constant 0.000000e+00 : f32
    %4 = vector.broadcast %cst : f32 to vector<8x16xf32>
    %c0_i32_2 = arith.constant 0 : i32
    %c64_i32 = arith.constant 64 : i32
    %5 = arith.muli %c0_i32_2, %c64_i32 : i32
    %6 = tpu.assume_multiple %5, 8 : i32
    %7 = arith.index_cast %6 : i32 to index
    %c0_3 = arith.constant 0 : index
    %8 = vector.load %arg2[%7, %c0_3] : memref<64x16xf32, #tpu.memory_space<vmem>>, vector<64x16xf32>
    %9 = arith.index_cast %6 : i32 to index
    %c0_4 = arith.constant 0 : index
    %10 = vector.load %arg3[%9, %c0_4] : memref<64x16xf32, #tpu.memory_space<vmem>>, vector<64x16xf32>
    %11 = arith.subf %8, %10 : vector<64x16xf32>
    %12 = arith.mulf %11, %11 : vector<64x16xf32>
    %13 = vector.shape_cast %12 : vector<64x16xf32> to vector<8x8x16xf32>
    %cst_5 = arith.constant dense<0.000000e+00> : vector<8x16xf32>
    %14 = vector.multi_reduction <add>, %13, %cst_5 [0] : vector<8x8x16xf32> to vector<8x16xf32>
    %15 = arith.addf %4, %14 : vector<8x16xf32>
    %c1_i32 = arith.constant 1 : i32
    %16 = arith.addf %3, %15 : vector<8x16xf32>
    %c0_6 = arith.constant 0 : index
    %c0_7 = arith.constant 0 : index
    %17 = vector.load %arg4[%c0_6, %c0_7] : memref<8x16xf32, #tpu.memory_space<vmem>>, vector<8x16xf32>
    tpu.vector_store %arg4[%c0_6, %c0_7], %16 {strides = array<i32>} : memref<8x16xf32, #tpu.memory_space<vmem>>, vector<8x16xf32>,
    return
  }
  func.func @transform_0(%arg0: i32, %arg1: i32) -> (i32, i32) {
    %c1_i32 = arith.constant 1 : i32
    %0 = arith.muli %arg0, %c1_i32 : i32
    %1 = arith.addi %0, %arg1 : i32
    %c0_i32 = arith.constant 0 : i32
    %c0_i32_0 = arith.constant 0 : i32
    return %1, %c0_i32 : i32, i32
  }
  func.func @transform_1(%arg0: i32, %arg1: i32) -> (i32, i32) {
    %c1_i32 = arith.constant 1 : i32
    %0 = arith.muli %arg0, %c1_i32 : i32
    %1 = arith.addi %0, %arg1 : i32
    %c0_i32 = arith.constant 0 : i32
    %c0_i32_0 = arith.constant 0 : i32
    return %1, %c0_i32 : i32, i32
  }
  func.func @transform_2(%arg0: i32, %arg1: i32) -> (i32, i32) {
    %c0_i32 = arith.constant 0 : i32
    %c0_i32_0 = arith.constant 0 : i32
    return %arg0, %c0_i32 : i32, i32
  }
}

</mosaic_0001>

<llo_original>
// kernel: tpu_custom_call.1
$region0: #{tpu_custom_call.1}
  #allocation0 [shape = 'u32[]', space=smem, size = 0x4, offset = 0x4, fixed_abs, tag = 'smem constant byte address 0x4 - core index']
  #allocation1 [shape = 'u32[72,128]{1,0:T(1,128)}', space=vmem, size = 0x9000, scoped, tag = 'internal scratch']
  %s0 = inlined_call_operand.vmem [shape: f32[64,16], index: 0, kind: input, shape index: {}]
  %s1 = inlined_call_operand.vmem [shape: f32[64,16], index: 1, kind: input, shape index: {}]
  %s2 = inlined_call_operand.hbm [shape: f32[8,16], index: 2, kind: output, shape index: {}]
  %s3 = sld [smem:[#allocation0]]
  $region22: #{tpu_custom_call.1} parent=0
    _
  %s5 = ssub.s32 1, %s3
  %s6 = scalar_select 0, %s5, %s3
  $region1: #{tpu_custom_call.1} parent=0
    #allocation2 [shape = 'u8[4096]{0}', space=vmem, size = 0x1000, scoped, tag = 'output window, operand 0, single buffered']
    #allocation3 [shape = 's32[1]{0}', space=sflag, size = 0x4, scoped, tag = 'scoped memory for tpu_custom_call.1']
    %7 = vsyncpa [#allocation3], 0
    // Predicated region
    $region2: #{tpu_custom_call.1} parent=1 // pred_check
      _
    $region3: #{tpu_custom_call.1} parent=1 // pred_check_branch
      %9 = sbr.rel (0) target = $region5
    $region4: #{tpu_custom_call.1} parent=1 // pred_region
      %s10 = sadd.s32 0, 0
      %s11 = smul.u32 8, %s10
      %p12 = scmp.lt.s32.totalorder %s11, 7
      %s13 = scalar_select %p12, %s11, 7
      %s14 = smul.addr %s13, 8
      %s15 = scalar_lea.vmem %s0, %s14
      %s16 = sadd.s32 0, 0
      %s17 = smul.u32 8, %s16
    $region5: #{tpu_custom_call.1} parent=1 // pred_fallthru
      _
    // Predicated region
    $region6: #{tpu_custom_call.1} parent=1 // pred_check
      _
    $region7: #{tpu_custom_call.1} parent=1 // pred_check_branch
      %19 = sbr.rel (0) target = $region9
    $region8: #{tpu_custom_call.1} parent=1 // pred_region
      %s20 = sadd.s32 0, 0
      %s21 = smul.u32 8, %s20
      %p22 = scmp.lt.s32.totalorder %s21, 7
      %s23 = scalar_select %p22, %s21, 7
      %s24 = smul.addr %s23, 8
      %s25 = scalar_lea.vmem %s1, %s24
      %s26 = sadd.s32 0, 0
      %s27 = smul.u32 8, %s26
    $region9: #{tpu_custom_call.1} parent=1 // pred_fallthru
      _
    %s28 = sadd.s32 0, 0
    %s29 = smul.u32 8, %s28
    %p30 = scmp.lt.s32.totalorder %s29, 7
    %s31 = scalar_select %p30, %s29, 7
    %s32 = smul.addr %s31, 8
    %s33 = scalar_lea.vmem %s0, %s32
    %s34 = sadd.s32 0, 0
    %s35 = smul.u32 8, %s34
    %p36 = scmp.lt.s32.totalorder %s35, 7
    %s37 = scalar_select %p36, %s35, 7
    %s38 = smul.addr %s37, 8
    %s39 = scalar_lea.vmem %s1, %s38
    %s40 = sadd.s32 0, 0
    %s41 = smul.u32 8, %s40
    %p42 = scmp.lt.s32.totalorder %s41, 7
    %s43 = scalar_select %p42, %s41, 7
    %s44 = smul.addr %s43, 8
    %s45 = scalar_lea.vmem %s0, %s44
    %s46 = sadd.s32 0, 0
    %s47 = smul.u32 8, %s46
    %s48 = sadd.s32 0, 0
    %s49 = smul.u32 8, %s48
    %p50 = scmp.lt.s32.totalorder %s49, 7
    %s51 = scalar_select %p50, %s49, 7
    %s52 = smul.addr %s51, 8
    %s53 = scalar_lea.vmem %s1, %s52
    %s54 = sadd.s32 0, 0
    %s55 = smul.u32 8, %s54
    %p56 = scmp.eq.s32.totalorder 0, 0
    // Predicated region
    $region10: #{tpu_custom_call.1} parent=1 // pred_check
      %p57 = pneg %p56
    $region11: #{tpu_custom_call.1} parent=1 // pred_check_branch
      %59 = sbr.rel (%p57) target = $region13
    $region12: #{tpu_custom_call.1} parent=1 // pred_region
      %vm60 = vcmask 130048
      %61 = vst.msk [vmem:[#allocation2] sm:$0xff] %vm60, 0.0
    $region13: #{tpu_custom_call.1} parent=1 // pred_fallthru
      _
    %v62 = vld [vmem:[#allocation2] sm:$0xff]
    %v63 = vld [vmem:[%s45] sm:$0xff]
    %v64 = vld [vmem:[%s45 + $0x8] sm:$0xff]
    %v65 = vld [vmem:[%s45 + $0x10] sm:$0xff]
    %v66 = vld [vmem:[%s45 + $0x18] sm:$0xff]
    %v67 = vld [vmem:[%s45 + $0x20] sm:$0xff]
    %v68 = vld [vmem:[%s45 + $0x28] sm:$0xff]
    %v69 = vld [vmem:[%s45 + $0x30] sm:$0xff]
    %v70 = vld [vmem:[%s45 + $0x38] sm:$0xff]
    %v71 = vld [vmem:[%s53] sm:$0xff]
    %v72 = vld [vmem:[%s53 + $0x8] sm:$0xff]
    %v73 = vld [vmem:[%s53 + $0x10] sm:$0xff]
    %v74 = vld [vmem:[%s53 + $0x18] sm:$0xff]
    %v75 = vld [vmem:[%s53 + $0x20] sm:$0xff]
    %v76 = vld [vmem:[%s53 + $0x28] sm:$0xff]
    %v77 = vld [vmem:[%s53 + $0x30] sm:$0xff]
    %v78 = vld [vmem:[%s53 + $0x38] sm:$0xff]
    %v79 = vsub.f32 %v63, %v71
    %v80 = vsub.f32 %v64, %v72
    %v81 = vsub.f32 %v65, %v73
    %v82 = vsub.f32 %v66, %v74
    %v83 = vsub.f32 %v67, %v75
    %v84 = vsub.f32 %v68, %v76
    %v85 = vsub.f32 %v69, %v77
    %v86 = vsub.f32 %v70, %v78
    %v87 = vmul.f32 %v79, %v79
    %v88 = vmul.f32 %v80, %v80
    %v89 = vmul.f32 %v81, %v81
    %v90 = vmul.f32 %v82, %v82
    %v91 = vmul.f32 %v83, %v83
    %v92 = vmul.f32 %v84, %v84
    %v93 = vmul.f32 %v85, %v85
    %v94 = vmul.f32 %v86, %v86
    %vm95 = vcmask 130048
    %v96 = vsel %vm95, %v87, 0.0
    %v97 = vsel %vm95, %v88, 0.0
    %v98 = vadd.f32 %v96, %v97
    %v99 = vsel %vm95, %v89, 0.0
    %v100 = vadd.f32 %v98, %v99
    %v101 = vsel %vm95, %v90, 0.0
    %v102 = vadd.f32 %v100, %v101
    %v103 = vsel %vm95, %v91, 0.0
    %v104 = vadd.f32 %v102, %v103
    %v105 = vsel %vm95, %v92, 0.0
    %v106 = vadd.f32 %v104, %v105
    %v107 = vsel %vm95, %v93, 0.0
    %v108 = vadd.f32 %v106, %v107
    %v109 = vsel %vm95, %v94, 0.0
    %v110 = vadd.f32 %v108, %v109
    %v111 = vadd.f32 %v110, 0.0
    %v112 = vadd.f32 %v62, %v111
    %113 = vst.msk [vmem:[#allocation2] sm:$0xff] %vm95, %v112
    // Predicated region
    $region14: #{tpu_custom_call.1} parent=1 // pred_check
      _
    $region15: #{tpu_custom_call.1} parent=1 // pred_check_branch
      %115 = sbr.rel (0) target = $region17
    $region16: #{tpu_custom_call.1} parent=1 // pred_region
      %117 = vsyncadd [#allocation3], 0
      %s119 = sshll.u32 [#allocation2], 4
      %s120 = int_to_ptr.vmem [resolvable:$true] %s119
      %s121 = sshll.u32 %s2, 4
      %s122 = int_to_ptr.hbm [resolvable:$true] %s121
      %124 = dma.vmem_to_hbm [thread:$0]  %s120, 128, %s122, [#allocation3]
    $region17: #{tpu_custom_call.1} parent=1 // pred_fallthru
      _
    // Predicated region
    $region18: #{tpu_custom_call.1} parent=1 // pred_check
      _
    $region19: #{tpu_custom_call.1} parent=1 // pred_check_branch
      %126 = sbr.rel (0) target = $region21
    $region20: #{tpu_custom_call.1} parent=1 // pred_region
      %128 = dma.done [#allocation3], 128
    $region21: #{tpu_custom_call.1} parent=1 // pred_fallthru
      _
    %129 = vsyncpa [#allocation3], 1

</llo_original>
